<compile_context>
chip_gen: v6e
topology: v6e:2x2x1
jax: 0.10.0
libtpu: 0.0.40
codegen_flags: <defaults>
</compile_context>

<pallas_src>
import math
import functools

import jax
import jax.numpy as jnp
from jax import lax
from jax.experimental import pallas as pl
from jax.experimental.pallas import tpu as pltpu


def _head_kernel(x_ref, wq_ref, wk_ref, wv_ref, out_ref, *rest,
                 H, T, tq, decoder, return_wei, compute_dtype, approx_recip):
    # x_ref:  (Bb, T, C)  batch block, resident across the q-tile grid axis
    # wq/wk/wv_ref: (C, H) pre-transposed weights (scale folded into wq), resident
    # out_ref: (Bb, tq, H); wei_ref (optional): (Bb, tq, T)
    # k_sc / v_sc: (Bb, T, H) scratch caches in the MXU compute dtype
    if return_wei:
        wei_ref, k_sc, v_sc = rest
    else:
        wei_ref = None
        k_sc, v_sc = rest

    qi = pl.program_id(1)

    # K / V projections once per batch block (first query tile), cached in VMEM scratch.
    @pl.when(qi == 0)
    def _():
        xc = x_ref[...].astype(compute_dtype)
        k = jnp.einsum('btc,ch->bth', xc, wk_ref[...],
                       preferred_element_type=jnp.float32)
        v = jnp.einsum('btc,ch->bth', xc, wv_ref[...],
                       preferred_element_type=jnp.float32)
        k_sc[...] = k.astype(compute_dtype)
        v_sc[...] = v.astype(compute_dtype)

    # Q projection for this query tile only (C**-0.5 already folded into wq).
    row0 = pl.multiple_of(qi * tq, 8)
    xq = x_ref[:, pl.ds(row0, tq), :].astype(compute_dtype)
    q = jnp.einsum('btc,ch->bth', xq, wq_ref[...],
                   preferred_element_type=jnp.float32).astype(compute_dtype)

    # Attention logits in f32 (MXU accumulate).
    s = jnp.einsum('bqh,bkh->bqk', q, k_sc[...],
                   preferred_element_type=jnp.float32)          # (Bb, tq, T)

    if decoder:
        # Causal mask generated in-kernel: cheap VPU filler, no (T,T) DMA / VMEM.
        rows = qi * tq + lax.broadcasted_iota(jnp.int32, (tq, T), 0)
        cols = lax.broadcasted_iota(jnp.int32, (tq, T), 1)
        s = jnp.where((cols <= rows)[None, :, :], s, -jnp.inf)

    # Numerically stable row softmax, kept in f32.
    m = jnp.max(s, axis=-1, keepdims=True)
    p = jnp.exp(s - m)
    denom = jnp.sum(p, axis=-1, keepdims=True)
    wei = p * pl.reciprocal(denom, approx=approx_recip)

    out = jnp.einsum('bqk,bkh->bqh', wei.astype(compute_dtype), v_sc[...],
                     preferred_element_type=jnp.float32)

    out_ref[...] = out.astype(out_ref.dtype)
    if return_wei:
        wei_ref[...] = wei.astype(wei_ref.dtype)


def _tpu_hardware():
    """(vmem_capacity_bytes, num_tensorcores) with conservative fallbacks."""
    try:
        vmem = int(pltpu.get_tpu_info().vmem_capacity_bytes)
    except Exception:
        vmem = 64 << 20
    try:
        kind = jax.devices()[0].device_kind.lower()
    except Exception:
        kind = ""
    num_tc = 2 if ("v7" in kind or "tpu7" in kind or "7x" in kind) else 1
    return vmem, num_tc


def _choose_tiles(B, T, C, H, x_isz, out_isz, wei_isz, budget_bytes, num_tc,
                  return_wei, compute_isz):
    """Pick (batch block bb, query tile tq) with full VMEM accounting:
    double-buffered I/O blocks + resident weights + KV scratch + f32 intermediates."""
    f32 = 4

    def per_step_bytes(bb, tq):
        total = 2 * bb * T * C * x_isz                 # x block (double-buffered)
        total += 2 * bb * tq * H * out_isz             # out block
        if return_wei:
            total += 2 * bb * tq * T * wei_isz         # wei block
        total += 2 * 3 * C * H * compute_isz           # resident weights
        total += 2 * bb * T * H * compute_isz          # K + V scratch
        total += 3 * bb * tq * T * f32                 # logits / exp / probs (f32)
        total += bb * tq * T * compute_isz             # probs cast for PV matmul
        total += bb * T * C * compute_isz              # cast copy of x rows
        total += bb * tq * H * (f32 + compute_isz)     # q
        total += 2 * bb * T * H * f32                  # K/V f32 accumulators (qi == 0)
        return total

    divs_B = [d for d in range(1, B + 1) if B % d == 0]
    tq_cands = sorted({d for d in range(8, T + 1, 8) if T % d == 0} | {T}, reverse=True)

    # Largest query tile for which at least bb = 1 fits (fall back to the smallest).
    tq = next((t for t in tq_cands if per_step_bytes(1, t) <= budget_bytes), tq_cands[-1])
    # Largest batch block that still fits for that tq.
    fits = [d for d in divs_B if per_step_bytes(d, tq) <= budget_bytes] or [1]
    bb = max(fits)

    # Megacore gating: only on 2-TC chips shrink bb so both cores get (even) work.
    if num_tc >= 2 and B >= 2:
        even2 = [d for d in fits if (B // d) >= 2 and (B // d) % 2 == 0]
        ge2 = [d for d in fits if (B // d) >= 2]
        if even2:
            bb = max(even2)
        elif ge2:
            bb = max(ge2)
    return bb, tq


def head_forward(x, w_key, w_query, w_value, *, decoder=True,
                 compute_dtype=jnp.bfloat16, return_wei=True,
                 out_dtype=None, wei_dtype=None):
    """x: (B, T, C). w_*: (head_size, C) PyTorch-style. Returns (out, wei) or out."""
    B, T, C = x.shape
    H = w_key.shape[0]
    out_dtype = x.dtype if out_dtype is None else out_dtype
    wei_dtype = x.dtype if wei_dtype is None else wei_dtype
    scale = C ** -0.5

    # One-time wrapper-side layout work (not per grid step): pre-transposed weights,
    # C**-0.5 folded into W_q, cast to the MXU compute dtype.
    w_q_t = (w_query.astype(jnp.float32).T * scale).astype(compute_dtype)   # (C, H)
    w_k_t = w_key.T.astype(compute_dtype)                                   # (C, H)
    w_v_t = w_value.T.astype(compute_dtype)                                 # (C, H)

    # Generation-aware VMEM budgeting.
    vmem_capacity, num_tc = _tpu_hardware()
    vmem_limit = int(min(vmem_capacity - (12 << 20), int(vmem_capacity * 0.8)))
    vmem_limit = max(vmem_limit, 32 << 20)
    budget = vmem_limit - (4 << 20)

    x_isz = jnp.dtype(x.dtype).itemsize
    out_isz = jnp.dtype(out_dtype).itemsize
    wei_isz = jnp.dtype(wei_dtype).itemsize
    cmp_isz = jnp.dtype(compute_dtype).itemsize

    bb, tq = _choose_tiles(B, T, C, H, x_isz, out_isz, wei_isz, budget, num_tc,
                           return_wei, cmp_isz)
    grid = (B // bb, T // tq)

    kernel = functools.partial(
        _head_kernel, H=H, T=T, tq=tq, decoder=decoder, return_wei=return_wei,
        compute_dtype=compute_dtype,
        approx_recip=(jnp.dtype(compute_dtype) != jnp.dtype(jnp.float32)))

    if return_wei:
        out_shape = (jax.ShapeDtypeStruct((B, T, H), out_dtype),
                     jax.ShapeDtypeStruct((B, T, T), wei_dtype))
        out_specs = (pl.BlockSpec((bb, tq, H), lambda b, q: (b, q, 0)),
                     pl.BlockSpec((bb, tq, T), lambda b, q: (b, q, 0)))
    else:
        out_shape = jax.ShapeDtypeStruct((B, T, H), out_dtype)
        out_specs = pl.BlockSpec((bb, tq, H), lambda b, q: (b, q, 0))

    grid_spec = pltpu.PrefetchScalarGridSpec(
        num_scalar_prefetch=0,
        grid=grid,
        in_specs=[
            pl.BlockSpec((bb, T, C), lambda b, q: (b, 0, 0)),   # x (resident across q tiles)
            pl.BlockSpec((C, H), lambda b, q: (0, 0)),          # W_q^T (scale folded in)
            pl.BlockSpec((C, H), lambda b, q: (0, 0)),          # W_k^T
            pl.BlockSpec((C, H), lambda b, q: (0, 0)),          # W_v^T
        ],
        out_specs=out_specs,
        scratch_shapes=[
            pltpu.VMEM((bb, T, H), compute_dtype),   # K cache for the current batch block
            pltpu.VMEM((bb, T, H), compute_dtype),   # V cache
        ],
    )

    # Advisory cost estimate for XLA's scheduler.
    flops = 2 * B * T * C * 3 * H + 2 * B * T * T * H + 2 * B * T * T * H
    transcendentals = B * T * T
    bytes_accessed = (B * T * C * x_isz + 3 * C * H * cmp_isz + B * T * H * out_isz
                      + (B * T * T * wei_isz if return_wei else 0))
    cost = pl.CostEstimate(flops=int(flops), transcendentals=int(transcendentals),
                           bytes_accessed=int(bytes_accessed))

    result = pl.pallas_call(
        kernel,
        out_shape=out_shape,
        grid_spec=grid_spec,
        cost_estimate=cost,
        compiler_params=pltpu.CompilerParams(
            dimension_semantics=("parallel", "arbitrary"),
            vmem_limit_bytes=vmem_limit,
        ),
    )(x, w_q_t, w_k_t, w_v_t)

    return result


def _reference(x, w_key, w_query, w_value, decoder=True):
    """Exact JAX transcription of the PyTorch Head.forward."""
    B, T, C = x.shape
    k = x @ w_key.T
    q = x @ w_query.T
    v = x @ w_value.T
    wei = (q @ jnp.swapaxes(k, -2, -1)) * (C ** -0.5)
    if decoder:
        tril = jnp.tril(jnp.ones((T, T)))
        wei = jnp.where(tril == 0, -jnp.inf, wei)
    wei = jax.nn.softmax(wei, axis=-1)
    return wei @ v, wei


if __name__ == "__main__":
    # Head(head_size=8, n_embd=32, block_size=8, name='Decoder'); x: (B=2, T=8, C=32)
    B, T, C, H = 2, 8, 32, 8

    key = jax.random.PRNGKey(0)
    kx, kk, kq, kv = jax.random.split(key, 4)
    x = jax.random.normal(kx, (B, T, C), dtype=jnp.float32)

    # Deterministic nn.Linear-style init: U(-1/sqrt(in), 1/sqrt(in)), weight shape (out, in)
    bound = 1.0 / math.sqrt(C)
    w_key = jax.random.uniform(kk, (H, C), jnp.float32, -bound, bound)
    w_query = jax.random.uniform(kq, (H, C), jnp.float32, -bound, bound)
    w_value = jax.random.uniform(kv, (H, C), jnp.float32, -bound, bound)

    out_ref, wei_ref = _reference(x, w_key, w_query, w_value, decoder=True)

    # Default fast path: bf16 MXU inputs, approx reciprocal -> loosened tolerance.
    out, wei = head_forward(x, w_key, w_query, w_value, decoder=True)
    out = jax.block_until_ready(out)
    wei = jax.block_until_ready(wei)
    assert out.shape == (B, T, H) and wei.shape == (B, T, T)
    assert jnp.allclose(out, out_ref, atol=3e-2, rtol=3e-2)
    assert jnp.allclose(wei, wei_ref, atol=3e-2, rtol=3e-2)

    # Exact f32 path + return_wei=False path: must match the reference tightly.
    out32 = head_forward(x, w_key, w_query, w_value, decoder=True,
                         compute_dtype=jnp.float32, return_wei=False)
    out32 = jax.block_until_ready(out32)
    assert out32.shape == (B, T, H)
    assert jnp.allclose(out32, out_ref, atol=1e-5, rtol=1e-5)

    print("KERNEL_OK")
</pallas_src>

<mosaic_0001>
module attributes {stable_mosaic.version = 11 : i64} {
  func.func @_head_kernel(%arg0: i32, %arg1: i32, %arg2: memref<2x8x32xf32, #tpu.memory_space<vmem>>, %arg3: memref<32x8xbf16, #tpu.memory_space<vmem>>, %arg4: memref<32x8xbf16, #tpu.memory_space<vmem>>, %arg5: memref<32x8xbf16, #tpu.memory_space<vmem>>, %arg6: memref<2x8x8xf32, #tpu.memory_space<vmem>>, %arg7: memref<2x8x8xf32, #tpu.memory_space<vmem>>, %arg8: memref<2x8x8xbf16, #tpu.memory_space<vmem>>, %arg9: memref<2x8x8xbf16, #tpu.memory_space<vmem>>) attributes {dimension_semantics = [#tpu.dimension_semantics<parallel>, #tpu.dimension_semantics<arbitrary>], iteration_bounds = array<i64: 1, 1>, scalar_prefetch = 0 : i64, scratch_operands = 2 : i64, tpu.core_type = #tpu.core_type<tc>, window_params = [{transform_indices = @transform_0, window_bounds = array<i64: 2, 8, 32>}, {pipeline_mode = #tpu.pipeline_mode<synchronous>, transform_indices = @transform_1, window_bounds = array<i64: 32, 8>}, {pipeline_mode = #tpu.pipeline_mode<synchronous>, transform_indices = @transform_2, window_bounds = array<i64: 32, 8>}, {pipeline_mode = #tpu.pipeline_mode<synchronous>, transform_indices = @transform_3, window_bounds = array<i64: 32, 8>}, {transform_indices = @transform_4, window_bounds = array<i64: 2, 8, 8>}, {transform_indices = @transform_5, window_bounds = array<i64: 2, 8, 8>}]} {
    %c0_i32 = arith.constant 0 : i32
    %0 = arith.cmpi eq, %arg1, %c0_i32 : i32
    %1 = arith.extui %0 : i1 to i32
    %c0_i32_0 = arith.constant 0 : i32
    %2 = arith.cmpi ne, %1, %c0_i32_0 : i32
    scf.if %2 {
      %c0_22 = arith.constant 0 : index
      %c0_23 = arith.constant 0 : index
      %c0_24 = arith.constant 0 : index
      %39 = vector.load %arg2[%c0_22, %c0_23, %c0_24] : memref<2x8x32xf32, #tpu.memory_space<vmem>>, vector<2x8x32xf32>
      %40 = arith.truncf %39 : vector<2x8x32xf32> to vector<2x8x32xbf16>
      %c0_25 = arith.constant 0 : index
      %c0_26 = arith.constant 0 : index
      %41 = vector.load %arg4[%c0_25, %c0_26] : memref<32x8xbf16, #tpu.memory_space<vmem>>, vector<32x8xbf16>
      "tpu.trace_start"() <{level = 10 : i32, message = "btc,ch->bth"}> : () -> ()
      %cst_27 = arith.constant dense<0.000000e+00> : vector<2x8x8xf32>
      %42 = tpu.matmul %40, %41, %cst_27 {dimension_numbers = #tpu.dot_dimension_numbers<[2], [0], [0, 1], [1], [0, 0, 0, 1, 1, 1], [], []>} : vector<2x8x32xbf16>, vector<32x8xbf16>, vector<2x8x8xf32> -> vector<2x8x8xf32>
      "tpu.trace_stop"() : () -> ()
      %c0_28 = arith.constant 0 : index
      %c0_29 = arith.constant 0 : index
      %43 = vector.load %arg5[%c0_28, %c0_29] : memref<32x8xbf16, #tpu.memory_space<vmem>>, vector<32x8xbf16>
      "tpu.trace_start"() <{level = 10 : i32, message = "btc,ch->bth"}> : () -> ()
      %cst_30 = arith.constant dense<0.000000e+00> : vector<2x8x8xf32>
      %44 = tpu.matmul %40, %43, %cst_30 {dimension_numbers = #tpu.dot_dimension_numbers<[2], [0], [0, 1], [1], [0, 0, 0, 1, 1, 1], [], []>} : vector<2x8x32xbf16>, vector<32x8xbf16>, vector<2x8x8xf32> -> vector<2x8x8xf32>
      "tpu.trace_stop"() : () -> ()
      %45 = arith.truncf %42 : vector<2x8x8xf32> to vector<2x8x8xbf16>
      %c0_31 = arith.constant 0 : index
      %c0_32 = arith.constant 0 : index
      %c0_33 = arith.constant 0 : index
      %46 = vector.load %arg8[%c0_31, %c0_32, %c0_33] : memref<2x8x8xbf16, #tpu.memory_space<vmem>>, vector<2x8x8xbf16>
      tpu.vector_store %arg8[%c0_31, %c0_32, %c0_33], %45 {strides = array<i32>} : memref<2x8x8xbf16, #tpu.memory_space<vmem>>, vector<2x8x8xbf16>,
      %47 = arith.truncf %44 : vector<2x8x8xf32> to vector<2x8x8xbf16>
      %c0_34 = arith.constant 0 : index
      %c0_35 = arith.constant 0 : index
      %c0_36 = arith.constant 0 : index
      %48 = vector.load %arg9[%c0_34, %c0_35, %c0_36] : memref<2x8x8xbf16, #tpu.memory_space<vmem>>, vector<2x8x8xbf16>
      tpu.vector_store %arg9[%c0_34, %c0_35, %c0_36], %47 {strides = array<i32>} : memref<2x8x8xbf16, #tpu.memory_space<vmem>>, vector<2x8x8xbf16>,
    } else {
    }
    %c8_i32 = arith.constant 8 : i32
    %3 = arith.muli %arg1, %c8_i32 : i32
    %4 = tpu.assume_multiple %3, 8 : i32
    %c0 = arith.constant 0 : index
    %5 = arith.index_cast %4 : i32 to index
    %c0_1 = arith.constant 0 : index
    %6 = vector.load %arg2[%c0, %5, %c0_1] : memref<2x8x32xf32, #tpu.memory_space<vmem>>, vector<2x8x32xf32>
    %7 = arith.truncf %6 : vector<2x8x32xf32> to vector<2x8x32xbf16>
    %c0_2 = arith.constant 0 : index
    %c0_3 = arith.constant 0 : index
    %8 = vector.load %arg3[%c0_2, %c0_3] : memref<32x8xbf16, #tpu.memory_space<vmem>>, vector<32x8xbf16>
    "tpu.trace_start"() <{level = 10 : i32, message = "btc,ch->bth"}> : () -> ()
    %cst = arith.constant dense<0.000000e+00> : vector<2x8x8xf32>
    %9 = tpu.matmul %7, %8, %cst {dimension_numbers = #tpu.dot_dimension_numbers<[2], [0], [0, 1], [1], [0, 0, 0, 1, 1, 1], [], []>} : vector<2x8x32xbf16>, vector<32x8xbf16>, vector<2x8x8xf32> -> vector<2x8x8xf32>
    "tpu.trace_stop"() : () -> ()
    %10 = arith.truncf %9 : vector<2x8x8xf32> to vector<2x8x8xbf16>
    %c0_4 = arith.constant 0 : index
    %c0_5 = arith.constant 0 : index
    %c0_6 = arith.constant 0 : index
    %11 = vector.load %arg8[%c0_4, %c0_5, %c0_6] : memref<2x8x8xbf16, #tpu.memory_space<vmem>>, vector<2x8x8xbf16>
    "tpu.trace_start"() <{level = 10 : i32, message = "bqh,bkh->bqk"}> : () -> ()
    %cst_7 = arith.constant dense<0.000000e+00> : vector<2x8x8xf32>
    %12 = tpu.matmul %10, %11, %cst_7 {dimension_numbers = #tpu.dot_dimension_numbers<[2], [2], [1], [1], [0, 0, 0, 1, 1, 1], [0], [0]>} : vector<2x8x8xbf16>, vector<2x8x8xbf16>, vector<2x8x8xf32> -> vector<2x8x8xf32>
    "tpu.trace_stop"() : () -> ()
    %c8_i32_8 = arith.constant 8 : i32
    %13 = arith.muli %arg1, %c8_i32_8 : i32
    %14 = tpu.iota {dimensions = array<i32: 0>} : vector<8x8xi32>
    %15 = vector.broadcast %13 : i32 to vector<8x8xi32>
    %16 = arith.addi %15, %14 : vector<8x8xi32>
    %17 = tpu.iota {dimensions = array<i32: 1>} : vector<8x8xi32>
    %18 = arith.cmpi sle, %17, %16 : vector<8x8xi32>
    %19 = vector.shape_cast %18 : vector<8x8xi1> to vector<1x8x8xi1>
    %cst_9 = arith.constant 0xFF800000 : f32
    %20 = vector.shape_cast %19 : vector<1x8x8xi1> to vector<1x8x8xi1>
    %21 = vector.broadcast %20 : vector<1x8x8xi1> to vector<2x8x8xi1>
    %22 = vector.broadcast %cst_9 : f32 to vector<2x8x8xf32>
    %23 = arith.select %21, %12, %22 : vector<2x8x8xi1>, vector<2x8x8xf32>
    %cst_10 = arith.constant dense<0xFF800000> : vector<2x8xf32>
    %24 = vector.multi_reduction <maximumf>, %23, %cst_10 [2] : vector<2x8x8xf32> to vector<2x8xf32>
    %25 = vector.shape_cast %24 : vector<2x8xf32> to vector<2x8x1xf32>
    %26 = vector.broadcast %25 : vector<2x8x1xf32> to vector<2x8x8xf32>
    %27 = arith.subf %23, %26 : vector<2x8x8xf32>
    %28 = math.exp %27 : vector<2x8x8xf32>
    %cst_11 = arith.constant dense<0.000000e+00> : vector<2x8xf32>
    %29 = vector.multi_reduction <add>, %28, %cst_11 [2] : vector<2x8x8xf32> to vector<2x8xf32>
    %30 = vector.shape_cast %29 : vector<2x8xf32> to vector<2x8x1xf32>
    %31 = tpu.reciprocal %30 {approx = true} : vector<2x8x1xf32> -> vector<2x8x1xf32>
    %32 = vector.broadcast %31 : vector<2x8x1xf32> to vector<2x8x8xf32>
    %33 = arith.mulf %28, %32 : vector<2x8x8xf32>
    %34 = arith.truncf %33 : vector<2x8x8xf32> to vector<2x8x8xbf16>
    %c0_12 = arith.constant 0 : index
    %c0_13 = arith.constant 0 : index
    %c0_14 = arith.constant 0 : index
    %35 = vector.load %arg9[%c0_12, %c0_13, %c0_14] : memref<2x8x8xbf16, #tpu.memory_space<vmem>>, vector<2x8x8xbf16>
    "tpu.trace_start"() <{level = 10 : i32, message = "bqk,bkh->bqh"}> : () -> ()
    %cst_15 = arith.constant dense<0.000000e+00> : vector<2x8x8xf32>
    %36 = tpu.matmul %34, %35, %cst_15 {dimension_numbers = #tpu.dot_dimension_numbers<[2], [1], [1], [2], [0, 0, 0, 1, 1, 2], [0], [0]>} : vector<2x8x8xbf16>, vector<2x8x8xbf16>, vector<2x8x8xf32> -> vector<2x8x8xf32>
    "tpu.trace_stop"() : () -> ()
    %c0_16 = arith.constant 0 : index
    %c0_17 = arith.constant 0 : index
    %c0_18 = arith.constant 0 : index
    %37 = vector.load %arg6[%c0_16, %c0_17, %c0_18] : memref<2x8x8xf32, #tpu.memory_space<vmem>>, vector<2x8x8xf32>
    tpu.vector_store %arg6[%c0_16, %c0_17, %c0_18], %36 {strides = array<i32>} : memref<2x8x8xf32, #tpu.memory_space<vmem>>, vector<2x8x8xf32>,
    %c0_19 = arith.constant 0 : index
    %c0_20 = arith.constant 0 : index
    %c0_21 = arith.constant 0 : index
    %38 = vector.load %arg7[%c0_19, %c0_20, %c0_21] : memref<2x8x8xf32, #tpu.memory_space<vmem>>, vector<2x8x8xf32>
    tpu.vector_store %arg7[%c0_19, %c0_20, %c0_21], %33 {strides = array<i32>} : memref<2x8x8xf32, #tpu.memory_space<vmem>>, vector<2x8x8xf32>,
    return
  }
  func.func @transform_0(%arg0: i32, %arg1: i32) -> (i32, i32, i32) {
    %c0_i32 = arith.constant 0 : i32
    %c0_i32_0 = arith.constant 0 : i32
    %c0_i32_1 = arith.constant 0 : i32
    return %arg0, %c0_i32, %c0_i32_0 : i32, i32, i32
  }
  func.func @transform_1(%arg0: i32, %arg1: i32) -> (i32, i32) {
    %c0_i32 = arith.constant 0 : i32
    %c0_i32_0 = arith.constant 0 : i32
    %c0_i32_1 = arith.constant 0 : i32
    return %c0_i32, %c0_i32_0 : i32, i32
  }
  func.func @transform_2(%arg0: i32, %arg1: i32) -> (i32, i32) {
    %c0_i32 = arith.constant 0 : i32
    %c0_i32_0 = arith.constant 0 : i32
    %c0_i32_1 = arith.constant 0 : i32
    return %c0_i32, %c0_i32_0 : i32, i32
  }
  func.func @transform_3(%arg0: i32, %arg1: i32) -> (i32, i32) {
    %c0_i32 = arith.constant 0 : i32
    %c0_i32_0 = arith.constant 0 : i32
    %c0_i32_1 = arith.constant 0 : i32
    return %c0_i32, %c0_i32_0 : i32, i32
  }
  func.func @transform_4(%arg0: i32, %arg1: i32) -> (i32, i32, i32) {
    %c0_i32 = arith.constant 0 : i32
    %c0_i32_0 = arith.constant 0 : i32
    return %arg0, %arg1, %c0_i32 : i32, i32, i32
  }
  func.func @transform_5(%arg0: i32, %arg1: i32) -> (i32, i32, i32) {
    %c0_i32 = arith.constant 0 : i32
    %c0_i32_0 = arith.constant 0 : i32
    return %arg0, %arg1, %c0_i32 : i32, i32, i32
  }
}

</mosaic_0001>

<llo_original>
// kernel: tpu_custom_call.1
$region0: #{tpu_custom_call.1}
  #allocation0 [shape = 'u32[]', space=smem, size = 0x4, offset = 0x4, fixed_abs, tag = 'smem constant byte address 0x4 - core index']
  #allocation1 [shape = 'u32[144,128]{1,0:T(1,128)}', space=vmem, size = 0x12000, scoped, tag = 'internal scratch']
  #allocation2 [shape = 'bf16[2,8,8]{2,1,0:T(8,128)(2,1)}', space=vmem, size = 0x1000, scoped, tag = 'scratch operand']
  #allocation3 [shape = 'bf16[2,8,8]{2,1,0:T(8,128)(2,1)}', space=vmem, size = 0x1000, scoped, tag = 'scratch operand']
  %s0 = inlined_call_operand.vmem [shape: f32[2,8,32], index: 0, kind: input, shape index: {}]
  %s1 = inlined_call_operand.vmem [shape: bf16[32,8], index: 1, kind: input, shape index: {}]
  %s2 = inlined_call_operand.vmem [shape: bf16[32,8], index: 2, kind: input, shape index: {}]
  %s3 = inlined_call_operand.vmem [shape: bf16[32,8], index: 3, kind: input, shape index: {}]
  %s4 = inlined_call_operand.hbm [shape: f32[2,8,8], index: 4, kind: output, shape index: {0}]
  %s5 = inlined_call_operand.hbm [shape: f32[2,8,8], index: 5, kind: output, shape index: {1}]
  %6 = xla_tuple %s4, %s5
  %s7 = sld [smem:[#allocation0]]
  $region38: #{tpu_custom_call.1} parent=0
    _
  %s9 = ssub.s32 1, %s7
  %s10 = scalar_select 0, %s9, %s7
  $region1: #{tpu_custom_call.1} parent=0
    #allocation4 [shape = 'u8[8192]{0}', space=vmem, size = 0x2000, scoped, tag = 'output window, operand 0, single buffered']
    #allocation5 [shape = 's32[1]{0}', space=sflag, size = 0x4, scoped, tag = 'scoped memory for tpu_custom_call.1']
    #allocation6 [shape = 'u8[8192]{0}', space=vmem, size = 0x2000, scoped, tag = 'output window, operand 1, single buffered']
    #allocation7 [shape = 's32[1]{0}', space=sflag, size = 0x4, scoped, tag = 'scoped memory for tpu_custom_call.1']
    %11 = vsyncpa [#allocation5], 0
    %12 = vsyncpa [#allocation7], 0
    // Predicated region
    $region2: #{tpu_custom_call.1} parent=1 // pred_check
      _
    $region3: #{tpu_custom_call.1} parent=1 // pred_check_branch
      %14 = sbr.rel (0) target = $region5
    $region4: #{tpu_custom_call.1} parent=1 // pred_region
      _
    $region5: #{tpu_custom_call.1} parent=1 // pred_fallthru
      _
    // Predicated region
    $region6: #{tpu_custom_call.1} parent=1 // pred_check
      _
    $region7: #{tpu_custom_call.1} parent=1 // pred_check_branch
      %16 = sbr.rel (0) target = $region9
    $region8: #{tpu_custom_call.1} parent=1 // pred_region
      _
    $region9: #{tpu_custom_call.1} parent=1 // pred_fallthru
      _
    // Predicated region
    $region10: #{tpu_custom_call.1} parent=1 // pred_check
      _
    $region11: #{tpu_custom_call.1} parent=1 // pred_check_branch
      %18 = sbr.rel (0) target = $region13
    $region12: #{tpu_custom_call.1} parent=1 // pred_region
      _
    $region13: #{tpu_custom_call.1} parent=1 // pred_fallthru
      _
    // Predicated region
    $region14: #{tpu_custom_call.1} parent=1 // pred_check
      _
    $region15: #{tpu_custom_call.1} parent=1 // pred_check_branch
      %20 = sbr.rel (0) target = $region17
    $region16: #{tpu_custom_call.1} parent=1 // pred_region
      _
    $region17: #{tpu_custom_call.1} parent=1 // pred_fallthru
      _
    %p22 = scmp.eq.s32.totalorder 0, 0
    // Predicated region
    $region18: #{tpu_custom_call.1} parent=1 // pred_check
      %p23 = pneg %p22
    $region19: #{tpu_custom_call.1} parent=1 // pred_check_branch
      %25 = sbr.rel (%p23) target = $region21
    $region20: #{tpu_custom_call.1} parent=1 // pred_region
      %v26 = vld [vmem:[%s0] sm:$0xff]
      %v27 = vld [vmem:[%s0 + $0x8] sm:$0xff]
      %v28 = vpack.c.bf16 %v26, %v26
      %v29 = vpack.c.bf16 %v27, %v27
      %v30 = vld [vmem:[%s2] sm:$0xf]
      %v31 = vld [vmem:[%s2 + $0x4] sm:$0xf]
      %v32 = vld [vmem:[%s2 + $0x8] sm:$0xf]
      %v33 = vld [vmem:[%s2 + $0xc] sm:$0xf]
      %v36 = vunpack.c.l.b16 %v28
      %v37 = vunpack.c.l.b16 %v29
      %v38 = vpack.c.b16 %v37, %v36
      %v43 = vunpack.c.l.b16 %v30
      %v44 = vunpack.c.l.b16 %v31
      %v45 = vunpack.c.l.b16 %v32
      %v46 = vunpack.c.l.b16 %v33
      %v47 = vpack.c.b16 %v44, %v43
      %v48 = vpack.c.b16 %v46, %v45
      %vm51 = vcmask 261120
      %v53 = vsel %vm51, %v38, 0
      %55 = vmatprep.subr.bf16.mxu0 0
      %56 = vmatpush1.bf16.msra.mxu0 0
      %57 = vmatprep.subr.bf16.mxu0 0
      %58 = vmatpush1.bf16.msra.mxu0 0
      %59 = vmatprep.subr.bf16.mxu0 0
      %60 = vmatpush1.bf16.msra.mxu0 0
      %61 = vmatprep.subr.bf16.mxu0 0
      %62 = vmatpush1.bf16.msra.mxu0 0
      %63 = vmatprep.subr.bf16.mxu0 0
      %64 = vmatpush1.bf16.msra.mxu0 0
      %65 = vmatprep.subr.bf16.mxu0 0
      %66 = vmatpush1.bf16.msra.mxu0 0
      %67 = vmatprep.subr.bf16.mxu0 0
      %68 = vmatpush1.bf16.msra.mxu0 %v48
      %69 = vmatprep.subr.bf16.mxu0 0
      %70 = vmatpush1.bf16.msra.mxu0 %v47
      %71 = vmatprep.subr.bf16.mxu0 0
      %72 = vmatpush2.bf16.msra.mxu0 0
      %73 = vmatprep.subr.bf16.mxu0 0
      %74 = vmatpush2.bf16.msra.mxu0 0
      %75 = vmatprep.subr.bf16.mxu0 0
      %76 = vmatpush2.bf16.msra.mxu0 0
      %77 = vmatprep.subr.bf16.mxu0 0
      %78 = vmatpush2.bf16.msra.mxu0 0
      %79 = vmatprep.subr.bf16.mxu0 0
      %80 = vmatpush2.bf16.msra.mxu0 0
      %81 = vmatprep.subr.bf16.mxu0 0
      %82 = vmatpush2.bf16.msra.mxu0 0
      %83 = vmatprep.subr.bf16.mxu0 0
      %84 = vmatpush2.bf16.msra.mxu0 0
      %85 = vmatprep.subr.bf16.mxu0 0
      %86 = vmatpush2.bf16.msra.mxu0 0
      %87 = vmatprep.mubr.bf16.mxu0 0
      %88 = vmatmul.mubr.bf16.gmra.mxu0 %v53
      %v89 = vpop.f32.mrf.mxu0
      %v90 = vadd.f32 0.0, %v89
      %v91 = vpop.f32.mrf.mxu0
      %v92 = vpop.f32.mrf.mxu0
      %v93 = vadd.f32 0.0, %v92
      %v94 = vpop.f32.mrf.mxu0
      %95 = vdwg.mxu0
      %v96 = vld [vmem:[%s3] sm:$0xf]
      %v97 = vld [vmem:[%s3 + $0x4] sm:$0xf]
      %v98 = vld [vmem:[%s3 + $0x8] sm:$0xf]
      %v99 = vld [vmem:[%s3 + $0xc] sm:$0xf]
      %v104 = vunpack.c.l.b16 %v96
      %v105 = vunpack.c.l.b16 %v97
      %v106 = vunpack.c.l.b16 %v98
      %v107 = vunpack.c.l.b16 %v99
      %v108 = vpack.c.b16 %v105, %v104
      %v109 = vpack.c.b16 %v107, %v106
      %112 = vmatprep.subr.bf16.mxu0 0
      %113 = vmatpush1.bf16.msra.mxu0 0
      %114 = vmatprep.subr.bf16.mxu0 0
      %115 = vmatpush1.bf16.msra.mxu0 0
      %116 = vmatprep.subr.bf16.mxu0 0
      %117 = vmatpush1.bf16.msra.mxu0 0
      %118 = vmatprep.subr.bf16.mxu0 0
      %119 = vmatpush1.bf16.msra.mxu0 0
      %120 = vmatprep.subr.bf16.mxu0 0
      %121 = vmatpush1.bf16.msra.mxu0 0
      %122 = vmatprep.subr.bf16.mxu0 0
      %123 = vmatpush1.bf16.msra.mxu0 0
      %124 = vmatprep.subr.bf16.mxu0 0
      %125 = vmatpush1.bf16.msra.mxu0 %v109
      %126 = vmatprep.subr.bf16.mxu0 0
      %127 = vmatpush1.bf16.msra.mxu0 %v108
      %128 = vmatprep.subr.bf16.mxu0 0
      %129 = vmatpush2.bf16.msra.mxu0 0
      %130 = vmatprep.subr.bf16.mxu0 0
      %131 = vmatpush2.bf16.msra.mxu0 0
      %132 = vmatprep.subr.bf16.mxu0 0
      %133 = vmatpush2.bf16.msra.mxu0 0
      %134 = vmatprep.subr.bf16.mxu0 0
      %135 = vmatpush2.bf16.msra.mxu0 0
      %136 = vmatprep.subr.bf16.mxu0 0
      %137 = vmatpush2.bf16.msra.mxu0 0
      %138 = vmatprep.subr.bf16.mxu0 0
      %139 = vmatpush2.bf16.msra.mxu0 0
      %140 = vmatprep.subr.bf16.mxu0 0
      %141 = vmatpush2.bf16.msra.mxu0 0
      %142 = vmatprep.subr.bf16.mxu0 0
      %143 = vmatpush2.bf16.msra.mxu0 0
      %144 = vmatprep.mubr.bf16.mxu0 0
      %145 = vmatmul.mubr.bf16.gmra.mxu0 %v53
      %v146 = vpop.f32.mrf.mxu0
      %v147 = vadd.f32 0.0, %v146
      %v148 = vpop.f32.mrf.mxu0
      %v149 = vpop.f32.mrf.mxu0
      %v150 = vadd.f32 0.0, %v149
      %v151 = vpop.f32.mrf.mxu0
      %152 = vdwg.mxu0
      %v153 = vpack.c.bf16 %v90, %v90
      %v154 = vpack.c.bf16 %v93, %v93
      %vm155 = vcmask 60416
      %156 = vst.msk [vmem:[#allocation2] sm:$0xf] %vm155, %v153
      %157 = vst.msk [vmem:[#allocation2 + $0x4] sm:$0xf] %vm155, %v154
      %v158 = vpack.c.bf16 %v147, %v147
      %v159 = vpack.c.bf16 %v150, %v150
      %160 = vst.msk [vmem:[#allocation3] sm:$0xf] %vm155, %v158
      %161 = vst.msk [vmem:[#allocation3 + $0x4] sm:$0xf] %vm155, %v159
    $region21: #{tpu_custom_call.1} parent=1 // pred_fallthru
      _
    %s162 = smul.u32 0, 8
    %s163 = scalar_lea.vmem %s0, %s162
    %v164 = vld [vmem:[%s163] sm:$0xff]
    %v165 = vld [vmem:[%s163 + $0x8] sm:$0xff]
    %v166 = vpack.c.bf16 %v164, %v164
    %v167 = vpack.c.bf16 %v165, %v165
    %v168 = vld [vmem:[%s1] sm:$0xf]
    %v169 = vld [vmem:[%s1 + $0x4] sm:$0xf]
    %v170 = vld [vmem:[%s1 + $0x8] sm:$0xf]
    %v171 = vld [vmem:[%s1 + $0xc] sm:$0xf]
    %v174 = vunpack.c.l.b16 %v166
    %v175 = vunpack.c.l.b16 %v167
    %v176 = vpack.c.b16 %v175, %v174
    %v181 = vunpack.c.l.b16 %v168
    %v182 = vunpack.c.l.b16 %v169
    %v183 = vunpack.c.l.b16 %v170
    %v184 = vunpack.c.l.b16 %v171
    %v185 = vpack.c.b16 %v182, %v181
    %v186 = vpack.c.b16 %v184, %v183
    %vm189 = vcmask 261120
    %v191 = vsel %vm189, %v176, 0
    %193 = vmatprep.subr.bf16.mxu0 0
    %194 = vmatpush1.bf16.msra.mxu0 0
    %195 = vmatprep.subr.bf16.mxu0 0
    %196 = vmatpush1.bf16.msra.mxu0 0
    %197 = vmatprep.subr.bf16.mxu0 0
    %198 = vmatpush1.bf16.msra.mxu0 0
    %199 = vmatprep.subr.bf16.mxu0 0
    %200 = vmatpush1.bf16.msra.mxu0 0
    %201 = vmatprep.subr.bf16.mxu0 0
    %202 = vmatpush1.bf16.msra.mxu0 0
    %203 = vmatprep.subr.bf16.mxu0 0
    %204 = vmatpush1.bf16.msra.mxu0 0
    %205 = vmatprep.subr.bf16.mxu0 0
    %206 = vmatpush1.bf16.msra.mxu0 %v186
    %207 = vmatprep.subr.bf16.mxu0 0
    %208 = vmatpush1.bf16.msra.mxu0 %v185
    %209 = vmatprep.subr.bf16.mxu0 0
    %210 = vmatpush2.bf16.msra.mxu0 0
    %211 = vmatprep.subr.bf16.mxu0 0
    %212 = vmatpush2.bf16.msra.mxu0 0
    %213 = vmatprep.subr.bf16.mxu0 0
    %214 = vmatpush2.bf16.msra.mxu0 0
    %215 = vmatprep.subr.bf16.mxu0 0
    %216 = vmatpush2.bf16.msra.mxu0 0
    %217 = vmatprep.subr.bf16.mxu0 0
    %218 = vmatpush2.bf16.msra.mxu0 0
    %219 = vmatprep.subr.bf16.mxu0 0
    %220 = vmatpush2.bf16.msra.mxu0 0
    %221 = vmatprep.subr.bf16.mxu0 0
    %222 = vmatpush2.bf16.msra.mxu0 0
    %223 = vmatprep.subr.bf16.mxu0 0
    %224 = vmatpush2.bf16.msra.mxu0 0
    %225 = vmatprep.mubr.bf16.mxu0 0
    %226 = vmatmul.mubr.bf16.gmra.mxu0 %v191
    %v227 = vpop.f32.mrf.mxu0
    %v228 = vadd.f32 0.0, %v227
    %v229 = vpop.f32.mrf.mxu0
    %v230 = vpop.f32.mrf.mxu0
    %v231 = vadd.f32 0.0, %v230
    %v232 = vpop.f32.mrf.mxu0
    %233 = vdwg.mxu0
    %v234 = vpack.c.bf16 %v228, %v228
    %v235 = vpack.c.bf16 %v231, %v231
    %v236 = vld [vmem:[#allocation2] sm:$0xf]
    %v237 = vld [vmem:[#allocation2 + $0x4] sm:$0xf]
    %vm238 = vcmask 64512
    %v240 = vsel %vm238, %v234, 0
    %v243 = vsel %vm238, %v236, 0
    %245 = vmatprep.subr.bf16.mxu0 0
    %246 = vmatpush1.bf16.xpose.msra.mxu0 0
    %247 = vmatprep.subr.bf16.mxu0 0
    %248 = vmatpush1.bf16.xpose.msra.mxu0 0
    %249 = vmatprep.subr.bf16.mxu0 0
    %250 = vmatpush1.bf16.xpose.msra.mxu0 0
    %251 = vmatprep.subr.bf16.mxu0 0
    %252 = vmatpush1.bf16.xpose.msra.mxu0 0
    %253 = vmatprep.subr.bf16.mxu0 0
    %254 = vmatpush1.bf16.xpose.msra.mxu0 0
    %255 = vmatprep.subr.bf16.mxu0 0
    %256 = vmatpush1.bf16.xpose.msra.mxu0 0
    %257 = vmatprep.subr.bf16.mxu0 0
    %258 = vmatpush1.bf16.xpose.msra.mxu0 0
    %259 = vmatprep.subr.bf16.mxu0 0
    %260 = vmatpush1.bf16.xpose.msra.mxu0 %v243
    %261 = vmatprep.subr.bf16.mxu0 0
    %262 = vmatpush2.bf16.xpose.msra.mxu0 0
    %263 = vmatprep.subr.bf16.mxu0 0
    %264 = vmatpush2.bf16.xpose.msra.mxu0 0
    %265 = vmatprep.subr.bf16.mxu0 0
    %266 = vmatpush2.bf16.xpose.msra.mxu0 0
    %267 = vmatprep.subr.bf16.mxu0 0
    %268 = vmatpush2.bf16.xpose.msra.mxu0 0
    %269 = vmatprep.subr.bf16.mxu0 0
    %270 = vmatpush2.bf16.xpose.msra.mxu0 0
    %271 = vmatprep.subr.bf16.mxu0 0
    %272 = vmatpush2.bf16.xpose.msra.mxu0 0
    %273 = vmatprep.subr.bf16.mxu0 0
    %274 = vmatpush2.bf16.xpose.msra.mxu0 0
    %275 = vmatprep.subr.bf16.mxu0 0
    %276 = vmatpush2.bf16.xpose.msra.mxu0 0
    %277 = vmatprep.mubr.bf16.mxu0 0
    %278 = vmatmul.mubr.bf16.gmra.mxu0 %v240
    %v279 = vpop.f32.mrf.mxu0
    %v280 = vadd.f32 0.0, %v279
    %v281 = vpop.f32.mrf.mxu0
    %v282 = vpop.f32.mrf.mxu0
    %v283 = vpop.f32.mrf.mxu0
    %284 = vdwg.mxu0
    %v286 = vsel %vm238, %v235, 0
    %v289 = vsel %vm238, %v237, 0
    %291 = vmatprep.subr.bf16.mxu0 0
    %292 = vmatpush1.bf16.xpose.msra.mxu0 0
    %293 = vmatprep.subr.bf16.mxu0 0
    %294 = vmatpush1.bf16.xpose.msra.mxu0 0
    %295 = vmatprep.subr.bf16.mxu0 0
    %296 = vmatpush1.bf16.xpose.msra.mxu0 0
    %297 = vmatprep.subr.bf16.mxu0 0
    %298 = vmatpush1.bf16.xpose.msra.mxu0 0
    %299 = vmatprep.subr.bf16.mxu0 0
    %300 = vmatpush1.bf16.xpose.msra.mxu0 0
    %301 = vmatprep.subr.bf16.mxu0 0
    %302 = vmatpush1.bf16.xpose.msra.mxu0 0
    %303 = vmatprep.subr.bf16.mxu0 0
    %304 = vmatpush1.bf16.xpose.msra.mxu0 0
    %305 = vmatprep.subr.bf16.mxu0 0
    %306 = vmatpush1.bf16.xpose.msra.mxu0 %v289
    %307 = vmatprep.subr.bf16.mxu0 0
    %308 = vmatpush2.bf16.xpose.msra.mxu0 0
    %309 = vmatprep.subr.bf16.mxu0 0
    %310 = vmatpush2.bf16.xpose.msra.mxu0 0
    %311 = vmatprep.subr.bf16.mxu0 0
    %312 = vmatpush2.bf16.xpose.msra.mxu0 0
    %313 = vmatprep.subr.bf16.mxu0 0
    %314 = vmatpush2.bf16.xpose.msra.mxu0 0
    %315 = vmatprep.subr.bf16.mxu0 0
    %316 = vmatpush2.bf16.xpose.msra.mxu0 0
    %317 = vmatprep.subr.bf16.mxu0 0
    %318 = vmatpush2.bf16.xpose.msra.mxu0 0
    %319 = vmatprep.subr.bf16.mxu0 0
    %320 = vmatpush2.bf16.xpose.msra.mxu0 0
    %321 = vmatprep.subr.bf16.mxu0 0
    %322 = vmatpush2.bf16.xpose.msra.mxu0 0
    %323 = vmatprep.mubr.bf16.mxu0 0
    %324 = vmatmul.mubr.bf16.gmra.mxu0 %v286
    %v325 = vpop.f32.mrf.mxu0
    %v326 = vadd.f32 0.0, %v325
    %v327 = vpop.f32.mrf.mxu0
    %v328 = vpop.f32.mrf.mxu0
    %v329 = vpop.f32.mrf.mxu0
    %330 = vdwg.mxu0
    %v331 = vlaneseq
    %v332 = vshrl.u32 %v331, 7
    %v333 = vstv %s162
    %v334 = vadd.s32 %v333, %v332
    %v335 = vlaneseq
    %v336 = vand.u32 %v335, 127
    %vm337 = vcmp.le.s32.totalorder %v336, %v334
    %v338 = vsel %vm337, 1, 0
    %vm339 = vcmp.eq.s32.totalorder %v338, 1
    %v340 = vsel %vm339, %v280, -inf
    %v341 = vsel %vm339, %v326, -inf
    %v342 = vsel %vm238, %v340, -inf
    %343 = vmax.xlane.f32.xlu0 %v342
    %v344 = vpop.xlane.xlu0 %343
    %v345 = vsel %vm238, %v341, -inf
    %346 = vmax.xlane.f32.xlu0 %v345
    %v347 = vpop.xlane.xlu0 %346
    %v348 = vsub.f32 %v340, %v344
    %v349 = vsub.f32 %v341, %v347
    %v350 = vmul.f32 %v348, 1.442695
    %v351 = vpow.pop %v350
    %v352 = vmul.f32 %v349, 1.442695
    %v353 = vpow.pop %v352
    %v354 = vsel %vm238, %v351, 0.0
    %355 = vadd.xlane.f32.xlu0 %v354
    %v356 = vpop.xlane.xlu0 %355
    %v357 = vsel %vm238, %v353, 0.0
    %358 = vadd.xlane.f32.xlu0 %v357
    %v359 = vpop.xlane.xlu0 %358
    %v360 = vrcp.pop %v356
    %v361 = vrcp.pop %v359
    %v362 = vmul.f32 %v351, %v360
    %v363 = vmul.f32 %v353, %v361
    %v364 = vpack.c.bf16 %v362, %v362
    %v365 = vpack.c.bf16 %v363, %v363
    %v366 = vld [vmem:[#allocation3] sm:$0xf]
    %v367 = vld [vmem:[#allocation3 + $0x4] sm:$0xf]
    %v369 = vsel %vm238, %v364, 0
    %vm371 = vcmask 1043456
    %v373 = vsel %vm371, %v366, 0
    %375 = vmatprep.subr.bf16.mxu0 0
    %376 = vmatpush1.bf16.msra.mxu0 0
    %377 = vmatprep.subr.bf16.mxu0 0
    %378 = vmatpush1.bf16.msra.mxu0 0
    %379 = vmatprep.subr.bf16.mxu0 0
    %380 = vmatpush1.bf16.msra.mxu0 0
    %381 = vmatprep.subr.bf16.mxu0 0
    %382 = vmatpush1.bf16.msra.mxu0 0
    %383 = vmatprep.subr.bf16.mxu0 0
    %384 = vmatpush1.bf16.msra.mxu0 0
    %385 = vmatprep.subr.bf16.mxu0 0
    %386 = vmatpush1.bf16.msra.mxu0 0
    %387 = vmatprep.subr.bf16.mxu0 0
    %388 = vmatpush1.bf16.msra.mxu0 0
    %389 = vmatprep.subr.bf16.mxu0 0
    %390 = vmatpush1.bf16.msra.mxu0 %v373
    %391 = vmatprep.subr.bf16.mxu0 0
    %392 = vmatpush2.bf16.msra.mxu0 0
    %393 = vmatprep.subr.bf16.mxu0 0
    %394 = vmatpush2.bf16.msra.mxu0 0
    %395 = vmatprep.subr.bf16.mxu0 0
    %396 = vmatpush2.bf16.msra.mxu0 0
    %397 = vmatprep.subr.bf16.mxu0 0
    %398 = vmatpush2.bf16.msra.mxu0 0
    %399 = vmatprep.subr.bf16.mxu0 0
    %400 = vmatpush2.bf16.msra.mxu0 0
    %401 = vmatprep.subr.bf16.mxu0 0
    %402 = vmatpush2.bf16.msra.mxu0 0
    %403 = vmatprep.subr.bf16.mxu0 0
    %404 = vmatpush2.bf16.msra.mxu0 0
    %405 = vmatprep.subr.bf16.mxu0 0
    %406 = vmatpush2.bf16.msra.mxu0 0
    %407 = vmatprep.mubr.bf16.mxu0 0
    %408 = vmatmul.mubr.bf16.gmra.mxu0 %v369
    %v409 = vpop.f32.mrf.mxu0
    %v410 = vadd.f32 0.0, %v409
    %v411 = vpop.f32.mrf.mxu0
    %v412 = vpop.f32.mrf.mxu0
    %v413 = vpop.f32.mrf.mxu0
    %414 = vdwg.mxu0
    %v416 = vsel %vm238, %v365, 0
    %v419 = vsel %vm371, %v367, 0
    %421 = vmatprep.subr.bf16.mxu0 0
    %422 = vmatpush1.bf16.msra.mxu0 0
    %423 = vmatprep.subr.bf16.mxu0 0
    %424 = vmatpush1.bf16.msra.mxu0 0
    %425 = vmatprep.subr.bf16.mxu0 0
    %426 = vmatpush1.bf16.msra.mxu0 0
    %427 = vmatprep.subr.bf16.mxu0 0
    %428 = vmatpush1.bf16.msra.mxu0 0
    %429 = vmatprep.subr.bf16.mxu0 0
    %430 = vmatpush1.bf16.msra.mxu0 0
    %431 = vmatprep.subr.bf16.mxu0 0
    %432 = vmatpush1.bf16.msra.mxu0 0
    %433 = vmatprep.subr.bf16.mxu0 0
    %434 = vmatpush1.bf16.msra.mxu0 0
    %435 = vmatprep.subr.bf16.mxu0 0
    %436 = vmatpush1.bf16.msra.mxu0 %v419
    %437 = vmatprep.subr.bf16.mxu0 0
    %438 = vmatpush2.bf16.msra.mxu0 0
    %439 = vmatprep.subr.bf16.mxu0 0
    %440 = vmatpush2.bf16.msra.mxu0 0
    %441 = vmatprep.subr.bf16.mxu0 0
    %442 = vmatpush2.bf16.msra.mxu0 0
    %443 = vmatprep.subr.bf16.mxu0 0
    %444 = vmatpush2.bf16.msra.mxu0 0
    %445 = vmatprep.subr.bf16.mxu0 0
    %446 = vmatpush2.bf16.msra.mxu0 0
    %447 = vmatprep.subr.bf16.mxu0 0
    %448 = vmatpush2.bf16.msra.mxu0 0
    %449 = vmatprep.subr.bf16.mxu0 0
    %450 = vmatpush2.bf16.msra.mxu0 0
    %451 = vmatprep.subr.bf16.mxu0 0
    %452 = vmatpush2.bf16.msra.mxu0 0
    %453 = vmatprep.mubr.bf16.mxu0 0
    %454 = vmatmul.mubr.bf16.gmra.mxu0 %v416
    %v455 = vpop.f32.mrf.mxu0
    %v456 = vadd.f32 0.0, %v455
    %v457 = vpop.f32.mrf.mxu0
    %v458 = vpop.f32.mrf.mxu0
    %v459 = vpop.f32.mrf.mxu0
    %460 = vdwg.mxu0
    %461 = vst.msk [vmem:[#allocation4] sm:$0xff] %vm238, %v410
    %462 = vst.msk [vmem:[#allocation4 + $0x8] sm:$0xff] %vm238, %v456
    %463 = vst.msk [vmem:[#allocation6] sm:$0xff] %vm238, %v362
    %464 = vst.msk [vmem:[#allocation6 + $0x8] sm:$0xff] %vm238, %v363
    // Predicated region
    $region22: #{tpu_custom_call.1} parent=1 // pred_check
      _
    $region23: #{tpu_custom_call.1} parent=1 // pred_check_branch
      %466 = sbr.rel (0) target = $region25
    $region24: #{tpu_custom_call.1} parent=1 // pred_region
      %s468 = ssub.s32 256, 256
      %469 = vsyncadd [#allocation5], %s468
      %s470 = sshll.u32 [#allocation4], 4
      %s471 = int_to_ptr.vmem [resolvable:$true] %s470
      %476 = dma.vmem_to_hbm [thread:$0]  %s471, 256, %s4, [#allocation5], 128, 128, 8
    $region25: #{tpu_custom_call.1} parent=1 // pred_fallthru
      _
    // Predicated region
    $region26: #{tpu_custom_call.1} parent=1 // pred_check
      _
    $region27: #{tpu_custom_call.1} parent=1 // pred_check_branch
      %478 = sbr.rel (0) target = $region29
    $region28: #{tpu_custom_call.1} parent=1 // pred_region
      %s480 = ssub.s32 256, 256
      %481 = vsyncadd [#allocation7], %s480
      %s482 = sshll.u32 [#allocation6], 4
      %s483 = int_to_ptr.vmem [resolvable:$true] %s482
      %488 = dma.vmem_to_hbm [thread:$0]  %s483, 256, %s5, [#allocation7], 128, 128, 8
    $region29: #{tpu_custom_call.1} parent=1 // pred_fallthru
      _
    // Predicated region
    $region30: #{tpu_custom_call.1} parent=1 // pred_check
      _
    $region31: #{tpu_custom_call.1} parent=1 // pred_check_branch
      %490 = sbr.rel (0) target = $region33
    $region32: #{tpu_custom_call.1} parent=1 // pred_region
      %491 = dma.done [#allocation5], 256
    $region33: #{tpu_custom_call.1} parent=1 // pred_fallthru
      _
    // Predicated region
    $region34: #{tpu_custom_call.1} parent=1 // pred_check
      _
    $region35: #{tpu_custom_call.1} parent=1 // pred_check_branch
      %493 = sbr.rel (0) target = $region37
    $region36: #{tpu_custom_call.1} parent=1 // pred_region
      %494 = dma.done [#allocation7], 256
    $region37: #{tpu_custom_call.1} parent=1 // pred_fallthru
      _
    %495 = vsyncpa [#allocation5], 1
    %496 = vsyncpa [#allocation7], 1

</llo_original>
